<compile_context>
chip_gen: v7x
topology: tpu7x:2x2x1
jax: 0.10.0
libtpu: 0.0.40
codegen_flags: <defaults>
</compile_context>

<pallas_src>
import functools

import jax
import jax.numpy as jnp
import numpy as np
from jax.experimental import pallas as pl
from jax.experimental.pallas import tpu as pltpu


def _convlstm_kernel(x_ref, w_ref, b_ref, wci_ref, wcf_ref, wco_ref,
                     cprev_ref, h_ref, c_ref, patch_ref, *,
                     K, Ctp, Cout, W_pad, L_valid, activation):
    """ConvLSTM cell for a block of `bn` batch elements.

    x_ref    : (bn, Ctp, L_full)   zero-padded combined [X, H_prev], flattened, bf16
    w_ref    : (4*Cout, K*K*Ctp)   conv weight, gate-major rows (i,f,c,o), bf16
    b_ref    : (4*Cout, 1)         conv bias, f32
    wci/wcf/wco_ref : (Cout, L_valid)  peephole weights in padded-flat space, f32
    cprev_ref: (bn, Cout, L_valid) f32
    h_ref, c_ref : (bn, Cout, L_valid) outputs, f32
    patch_ref: (K*K*Ctp, L_valid)  VMEM scratch for the im2col patch (bf16)
    """
    if activation == "tanh":
        act = jnp.tanh
    else:  # 'relu'
        act = lambda v: jnp.maximum(v, 0.0)

    bn = x_ref.shape[0]
    tap_offsets = tuple(dy * W_pad + dx for dy in range(K) for dx in range(K))

    for s in range(bn):  # static, bn is small
        # Build im2col patch in VMEM with static lane-shifted slab copies.
        for t, off in enumerate(tap_offsets):
            patch_ref[pl.ds(t * Ctp, Ctp), :] = x_ref[s, :, pl.ds(off, L_valid)]

        # Single fused MXU matmul: bf16 x bf16 -> f32 accumulate.
        gates = jnp.dot(w_ref[...], patch_ref[...],
                        preferred_element_type=jnp.float32)
        gates = gates + b_ref[...]                      # (4*Cout, L_valid)

        i_conv = gates[0 * Cout:1 * Cout]
        f_conv = gates[1 * Cout:2 * Cout]
        g_conv = gates[2 * Cout:3 * Cout]
        o_conv = gates[3 * Cout:4 * Cout]

        c_prev = cprev_ref[s]                           # (Cout, L_valid) f32
        i_gate = jax.nn.sigmoid(i_conv + wci_ref[...] * c_prev)
        f_gate = jax.nn.sigmoid(f_conv + wcf_ref[...] * c_prev)
        c_new = f_gate * c_prev + i_gate * act(g_conv)
        o_gate = jax.nn.sigmoid(o_conv + wco_ref[...] * c_new)

        h_ref[s] = o_gate * act(c_new)
        c_ref[s] = c_new


def conv_lstm_cell(X, H_prev, C_prev, conv_w, conv_b, W_ci, W_cf, W_co,
                   *, kernel_size, padding, activation="tanh",
                   batch_block=None, matmul_dtype=jnp.bfloat16):
    """Forward pass matching ConvLSTMCell.forward. NCHW in, NCHW out."""
    N, Cin, Hh, Ww = X.shape
    Cout = H_prev.shape[1]
    Ctot = Cin + Cout
    K, p = kernel_size, padding
    KK = K * K
    assert Hh + 2 * p - K + 1 == Hh, "ConvLSTMCell requires 'same' conv output"

    W_pad = Ww + 2 * p
    L_valid = Hh * W_pad                  # padded-flat spatial length (lane dim)
    L_full = (Hh + 2 * p + 1) * W_pad     # +1 zero row so every tap slab is in-bounds
    Ctp = ((Ctot + 7) // 8) * 8           # pad channels to a sublane multiple

    if batch_block is None:
        # >=2 grid steps when possible so both v7x TensorCores get work;
        # larger N gets multiple samples per block to amortize per-step overhead.
        batch_block = N // 2 if (N >= 2 and N % 2 == 0) else 1
    assert N % batch_block == 0
    num_blocks = N // batch_block

    # ---- glue: layout prep in plain JAX (no im2col materialized in HBM) ------
    combined = jnp.concatenate([X, H_prev], axis=1)                    # (N,Ctot,H,W)
    combined = jnp.pad(combined, ((0, 0), (0, Ctp - Ctot), (0, 0), (0, 0)))
    padded = jnp.pad(combined, ((0, 0), (0, 0), (p, p + 1), (p, p)))   # (N,Ctp,H+2p+1,W_pad)
    x_flat = padded.reshape(N, Ctp, L_full).astype(matmul_dtype)

    # conv_w is OIHW (4*Cout, Ctot, K, K): gate g owns out-channels [g*Cout,(g+1)*Cout).
    w_p = jnp.pad(conv_w, ((0, 0), (0, Ctp - Ctot), (0, 0), (0, 0)))
    w_all = jnp.transpose(w_p, (0, 2, 3, 1)).reshape(4 * Cout, KK * Ctp)
    w_all = w_all.astype(matmul_dtype)
    b = conv_b.reshape(4 * Cout, 1).astype(jnp.float32)

    def flat_peep(w):  # (Cout,H,W) -> (Cout, L_valid) in padded-flat column space
        return jnp.pad(w, ((0, 0), (0, 0), (0, W_pad - Ww))).reshape(
            Cout, L_valid).astype(jnp.float32)

    wci, wcf, wco = (flat_peep(w) for w in (W_ci, W_cf, W_co))
    c_prev = jnp.pad(C_prev, ((0, 0), (0, 0), (0, 0), (0, W_pad - Ww))).reshape(
        N, Cout, L_valid).astype(jnp.float32)

    kernel = functools.partial(_convlstm_kernel, K=K, Ctp=Ctp, Cout=Cout,
                               W_pad=W_pad, L_valid=L_valid,
                               activation=activation)

    h_pad, c_pad = pl.pallas_call(
        kernel,
        out_shape=(jax.ShapeDtypeStruct((N, Cout, L_valid), jnp.float32),
                   jax.ShapeDtypeStruct((N, Cout, L_valid), jnp.float32)),
        grid_spec=pltpu.PrefetchScalarGridSpec(
            num_scalar_prefetch=0,
            grid=(num_blocks,),
            in_specs=[
                pl.BlockSpec((batch_block, Ctp, L_full), lambda n: (n, 0, 0)),
                pl.BlockSpec((4 * Cout, KK * Ctp), lambda n: (0, 0)),
                pl.BlockSpec((4 * Cout, 1), lambda n: (0, 0)),
                pl.BlockSpec((Cout, L_valid), lambda n: (0, 0)),
                pl.BlockSpec((Cout, L_valid), lambda n: (0, 0)),
                pl.BlockSpec((Cout, L_valid), lambda n: (0, 0)),
                pl.BlockSpec((batch_block, Cout, L_valid), lambda n: (n, 0, 0)),
            ],
            out_specs=[
                pl.BlockSpec((batch_block, Cout, L_valid), lambda n: (n, 0, 0)),
                pl.BlockSpec((batch_block, Cout, L_valid), lambda n: (n, 0, 0)),
            ],
            scratch_shapes=[pltpu.VMEM((KK * Ctp, L_valid), matmul_dtype)],
        ),
        compiler_params=pltpu.CompilerParams(
            dimension_semantics=("parallel",),
            vmem_limit_bytes=32 * 1024 * 1024),
    )(x_flat, w_all, b, wci, wcf, wco, c_prev)

    # Drop the W-padding columns; result is already NCHW (no transpose needed).
    H_new = h_pad.reshape(N, Cout, Hh, W_pad)[:, :, :, :Ww]
    C_new = c_pad.reshape(N, Cout, Hh, W_pad)[:, :, :, :Ww]
    return H_new, C_new


def reference_forward(X, H_prev, C_prev, conv_w, conv_b, W_ci, W_cf, W_co,
                      *, padding, activation="tanh", operand_dtype=jnp.float32):
    """Pure-JAX reference mirroring the PyTorch module (NCHW).

    `operand_dtype=bf16` rounds the conv operands the same way the kernel does,
    so the comparison isolates kernel correctness from intended quantization.
    """
    act = jnp.tanh if activation == "tanh" else jax.nn.relu
    inp = jnp.concatenate([X, H_prev], axis=1)
    inp_q = inp.astype(operand_dtype).astype(jnp.float32)
    w_q = conv_w.astype(operand_dtype).astype(jnp.float32)
    conv_out = jax.lax.conv_general_dilated(
        inp_q, w_q, window_strides=(1, 1),
        padding=((padding, padding), (padding, padding)),
        dimension_numbers=("NCHW", "OIHW", "NCHW"),
        precision=jax.lax.Precision.HIGHEST)
    conv_out = conv_out + conv_b[None, :, None, None]
    i_conv, f_conv, g_conv, o_conv = jnp.split(conv_out, 4, axis=1)
    i_gate = jax.nn.sigmoid(i_conv + W_ci[None] * C_prev)
    f_gate = jax.nn.sigmoid(f_conv + W_cf[None] * C_prev)
    C = f_gate * C_prev + i_gate * act(g_conv)
    o_gate = jax.nn.sigmoid(o_conv + W_co[None] * C)
    H = o_gate * act(C)
    return H, C


if __name__ == "__main__":
    key = jax.random.PRNGKey(0)
    N, Cin, Cout, Hh, Ww, K, pad = 2, 4, 8, 16, 16, 3, 1
    ks = jax.random.split(key, 8)

    X = jax.random.normal(ks[0], (N, Cin, Hh, Ww), jnp.float32)
    H_prev = jax.random.normal(ks[1], (N, Cout, Hh, Ww), jnp.float32)
    C_prev = jax.random.normal(ks[2], (N, Cout, Hh, Ww), jnp.float32)

    # Deterministic synthetic parameters (shapes from ConvLSTMCell.__init__).
    conv_w = 0.1 * jax.random.normal(ks[3], (4 * Cout, Cin + Cout, K, K), jnp.float32)
    conv_b = 0.1 * jax.random.normal(ks[4], (4 * Cout,), jnp.float32)
    W_ci = 0.1 * jax.random.normal(ks[5], (Cout, Hh, Ww), jnp.float32)
    W_cf = 0.1 * jax.random.normal(ks[6], (Cout, Hh, Ww), jnp.float32)
    W_co = 0.1 * jax.random.normal(ks[7], (Cout, Hh, Ww), jnp.float32)

    H_out, C_out = conv_lstm_cell(
        X, H_prev, C_prev, conv_w, conv_b, W_ci, W_cf, W_co,
        kernel_size=K, padding=pad, activation="tanh")
    jax.block_until_ready((H_out, C_out))

    # Tight check vs. a reference that applies the same bf16 operand rounding.
    H_q, C_q = reference_forward(
        X, H_prev, C_prev, conv_w, conv_b, W_ci, W_cf, W_co,
        padding=pad, activation="tanh", operand_dtype=jnp.bfloat16)
    np.testing.assert_allclose(np.asarray(H_out), np.asarray(H_q), rtol=2e-3, atol=2e-3)
    np.testing.assert_allclose(np.asarray(C_out), np.asarray(C_q), rtol=2e-3, atol=2e-3)

    # Loose sanity check vs. the full-f32 reference (bounds the bf16 quantization).
    H_f, C_f = reference_forward(
        X, H_prev, C_prev, conv_w, conv_b, W_ci, W_cf, W_co,
        padding=pad, activation="tanh", operand_dtype=jnp.float32)
    np.testing.assert_allclose(np.asarray(H_out), np.asarray(H_f), rtol=5e-2, atol=5e-2)
    np.testing.assert_allclose(np.asarray(C_out), np.asarray(C_f), rtol=5e-2, atol=5e-2)

    print("KERNEL_OK")
</pallas_src>

<mosaic_0001>
module attributes {stable_mosaic.version = 11 : i64} {
  func.func @_convlstm_kernel(%arg0: i32, %arg1: memref<1x16x342xbf16, #tpu.memory_space<vmem>>, %arg2: memref<32x144xbf16, #tpu.memory_space<vmem>>, %arg3: memref<32x1xf32, #tpu.memory_space<vmem>>, %arg4: memref<8x288xf32, #tpu.memory_space<vmem>>, %arg5: memref<8x288xf32, #tpu.memory_space<vmem>>, %arg6: memref<8x288xf32, #tpu.memory_space<vmem>>, %arg7: memref<1x8x288xf32, #tpu.memory_space<vmem>>, %arg8: memref<1x8x288xf32, #tpu.memory_space<vmem>>, %arg9: memref<1x8x288xf32, #tpu.memory_space<vmem>>, %arg10: memref<144x288xbf16, #tpu.memory_space<vmem>>) attributes {dimension_semantics = [#tpu.dimension_semantics<parallel>], iteration_bounds = array<i64: 2>, scalar_prefetch = 0 : i64, scratch_operands = 1 : i64, tpu.core_type = #tpu.core_type<tc>, window_params = [{transform_indices = @transform_0, window_bounds = array<i64: 1, 16, 342>}, {pipeline_mode = #tpu.pipeline_mode<synchronous>, transform_indices = @transform_1, window_bounds = array<i64: 32, 144>}, {pipeline_mode = #tpu.pipeline_mode<synchronous>, transform_indices = @transform_2, window_bounds = array<i64: 32, 1>}, {pipeline_mode = #tpu.pipeline_mode<synchronous>, transform_indices = @transform_3, window_bounds = array<i64: 8, 288>}, {pipeline_mode = #tpu.pipeline_mode<synchronous>, transform_indices = @transform_4, window_bounds = array<i64: 8, 288>}, {pipeline_mode = #tpu.pipeline_mode<synchronous>, transform_indices = @transform_5, window_bounds = array<i64: 8, 288>}, {transform_indices = @transform_6, window_bounds = array<i64: 1, 8, 288>}, {transform_indices = @transform_7, window_bounds = array<i64: 1, 8, 288>}, {transform_indices = @transform_8, window_bounds = array<i64: 1, 8, 288>}]} {
    %c0 = arith.constant 0 : index
    %c0_0 = arith.constant 0 : index
    %c0_1 = arith.constant 0 : index
    %0 = vector.load %arg1[%c0, %c0_0, %c0_1] : memref<1x16x342xbf16, #tpu.memory_space<vmem>>, vector<1x16x288xbf16>
    %1 = vector.shape_cast %0 : vector<1x16x288xbf16> to vector<16x288xbf16>
    %c0_2 = arith.constant 0 : index
    %c0_3 = arith.constant 0 : index
    %2 = vector.load %arg10[%c0_2, %c0_3] : memref<144x288xbf16, #tpu.memory_space<vmem>>, vector<16x288xbf16>
    tpu.vector_store %arg10[%c0_2, %c0_3], %1 {strides = array<i32>} : memref<144x288xbf16, #tpu.memory_space<vmem>>, vector<16x288xbf16>,
    %c0_4 = arith.constant 0 : index
    %c0_5 = arith.constant 0 : index
    %c1 = arith.constant 1 : index
    %3 = vector.load %arg1[%c0_4, %c0_5, %c1] : memref<1x16x342xbf16, #tpu.memory_space<vmem>>, vector<1x16x288xbf16>
    %4 = vector.shape_cast %3 : vector<1x16x288xbf16> to vector<16x288xbf16>
    %c16 = arith.constant 16 : index
    %c0_6 = arith.constant 0 : index
    %5 = vector.load %arg10[%c16, %c0_6] : memref<144x288xbf16, #tpu.memory_space<vmem>>, vector<16x288xbf16>
    tpu.vector_store %arg10[%c16, %c0_6], %4 {strides = array<i32>} : memref<144x288xbf16, #tpu.memory_space<vmem>>, vector<16x288xbf16>,
    %c0_7 = arith.constant 0 : index
    %c0_8 = arith.constant 0 : index
    %c2 = arith.constant 2 : index
    %6 = vector.load %arg1[%c0_7, %c0_8, %c2] : memref<1x16x342xbf16, #tpu.memory_space<vmem>>, vector<1x16x288xbf16>
    %7 = vector.shape_cast %6 : vector<1x16x288xbf16> to vector<16x288xbf16>
    %c32 = arith.constant 32 : index
    %c0_9 = arith.constant 0 : index
    %8 = vector.load %arg10[%c32, %c0_9] : memref<144x288xbf16, #tpu.memory_space<vmem>>, vector<16x288xbf16>
    tpu.vector_store %arg10[%c32, %c0_9], %7 {strides = array<i32>} : memref<144x288xbf16, #tpu.memory_space<vmem>>, vector<16x288xbf16>,
    %c0_10 = arith.constant 0 : index
    %c0_11 = arith.constant 0 : index
    %c18 = arith.constant 18 : index
    %9 = vector.load %arg1[%c0_10, %c0_11, %c18] : memref<1x16x342xbf16, #tpu.memory_space<vmem>>, vector<1x16x288xbf16>
    %10 = vector.shape_cast %9 : vector<1x16x288xbf16> to vector<16x288xbf16>
    %c48 = arith.constant 48 : index
    %c0_12 = arith.constant 0 : index
    %11 = vector.load %arg10[%c48, %c0_12] : memref<144x288xbf16, #tpu.memory_space<vmem>>, vector<16x288xbf16>
    tpu.vector_store %arg10[%c48, %c0_12], %10 {strides = array<i32>} : memref<144x288xbf16, #tpu.memory_space<vmem>>, vector<16x288xbf16>,
    %c0_13 = arith.constant 0 : index
    %c0_14 = arith.constant 0 : index
    %c19 = arith.constant 19 : index
    %12 = vector.load %arg1[%c0_13, %c0_14, %c19] : memref<1x16x342xbf16, #tpu.memory_space<vmem>>, vector<1x16x288xbf16>
    %13 = vector.shape_cast %12 : vector<1x16x288xbf16> to vector<16x288xbf16>
    %c64 = arith.constant 64 : index
    %c0_15 = arith.constant 0 : index
    %14 = vector.load %arg10[%c64, %c0_15] : memref<144x288xbf16, #tpu.memory_space<vmem>>, vector<16x288xbf16>
    tpu.vector_store %arg10[%c64, %c0_15], %13 {strides = array<i32>} : memref<144x288xbf16, #tpu.memory_space<vmem>>, vector<16x288xbf16>,
    %c0_16 = arith.constant 0 : index
    %c0_17 = arith.constant 0 : index
    %c20 = arith.constant 20 : index
    %15 = vector.load %arg1[%c0_16, %c0_17, %c20] : memref<1x16x342xbf16, #tpu.memory_space<vmem>>, vector<1x16x288xbf16>
    %16 = vector.shape_cast %15 : vector<1x16x288xbf16> to vector<16x288xbf16>
    %c80 = arith.constant 80 : index
    %c0_18 = arith.constant 0 : index
    %17 = vector.load %arg10[%c80, %c0_18] : memref<144x288xbf16, #tpu.memory_space<vmem>>, vector<16x288xbf16>
    tpu.vector_store %arg10[%c80, %c0_18], %16 {strides = array<i32>} : memref<144x288xbf16, #tpu.memory_space<vmem>>, vector<16x288xbf16>,
    %c0_19 = arith.constant 0 : index
    %c0_20 = arith.constant 0 : index
    %c36 = arith.constant 36 : index
    %18 = vector.load %arg1[%c0_19, %c0_20, %c36] : memref<1x16x342xbf16, #tpu.memory_space<vmem>>, vector<1x16x288xbf16>
    %19 = vector.shape_cast %18 : vector<1x16x288xbf16> to vector<16x288xbf16>
    %c96 = arith.constant 96 : index
    %c0_21 = arith.constant 0 : index
    %20 = vector.load %arg10[%c96, %c0_21] : memref<144x288xbf16, #tpu.memory_space<vmem>>, vector<16x288xbf16>
    tpu.vector_store %arg10[%c96, %c0_21], %19 {strides = array<i32>} : memref<144x288xbf16, #tpu.memory_space<vmem>>, vector<16x288xbf16>,
    %c0_22 = arith.constant 0 : index
    %c0_23 = arith.constant 0 : index
    %c37 = arith.constant 37 : index
    %21 = vector.load %arg1[%c0_22, %c0_23, %c37] : memref<1x16x342xbf16, #tpu.memory_space<vmem>>, vector<1x16x288xbf16>
    %22 = vector.shape_cast %21 : vector<1x16x288xbf16> to vector<16x288xbf16>
    %c112 = arith.constant 112 : index
    %c0_24 = arith.constant 0 : index
    %23 = vector.load %arg10[%c112, %c0_24] : memref<144x288xbf16, #tpu.memory_space<vmem>>, vector<16x288xbf16>
    tpu.vector_store %arg10[%c112, %c0_24], %22 {strides = array<i32>} : memref<144x288xbf16, #tpu.memory_space<vmem>>, vector<16x288xbf16>,
    %c0_25 = arith.constant 0 : index
    %c0_26 = arith.constant 0 : index
    %c38 = arith.constant 38 : index
    %24 = vector.load %arg1[%c0_25, %c0_26, %c38] : memref<1x16x342xbf16, #tpu.memory_space<vmem>>, vector<1x16x288xbf16>
    %25 = vector.shape_cast %24 : vector<1x16x288xbf16> to vector<16x288xbf16>
    %c128 = arith.constant 128 : index
    %c0_27 = arith.constant 0 : index
    %26 = vector.load %arg10[%c128, %c0_27] : memref<144x288xbf16, #tpu.memory_space<vmem>>, vector<16x288xbf16>
    tpu.vector_store %arg10[%c128, %c0_27], %25 {strides = array<i32>} : memref<144x288xbf16, #tpu.memory_space<vmem>>, vector<16x288xbf16>,
    %c0_28 = arith.constant 0 : index
    %c0_29 = arith.constant 0 : index
    %27 = vector.load %arg2[%c0_28, %c0_29] : memref<32x144xbf16, #tpu.memory_space<vmem>>, vector<32x144xbf16>
    %c0_30 = arith.constant 0 : index
    %c0_31 = arith.constant 0 : index
    %28 = vector.load %arg10[%c0_30, %c0_31] : memref<144x288xbf16, #tpu.memory_space<vmem>>, vector<144x288xbf16>
    %cst = arith.constant dense<0.000000e+00> : vector<32x288xf32>
    %29 = tpu.matmul %27, %28, %cst {dimension_numbers = #tpu.dot_dimension_numbers<[1], [0], [0], [1], [0, 0, 1, 1], [], []>} : vector<32x144xbf16>, vector<144x288xbf16>, vector<32x288xf32> -> vector<32x288xf32>
    %c0_32 = arith.constant 0 : index
    %c0_33 = arith.constant 0 : index
    %30 = vector.load %arg3[%c0_32, %c0_33] : memref<32x1xf32, #tpu.memory_space<vmem>>, vector<32x1xf32>
    %31 = vector.broadcast %30 : vector<32x1xf32> to vector<32x288xf32>
    %32 = arith.addf %29, %31 : vector<32x288xf32>
    %33 = vector.extract_strided_slice %32 {offsets = [0, 0], sizes = [8, 288], strides = [1, 1]} : vector<32x288xf32> to vector<8x288xf32>
    %34 = vector.extract_strided_slice %32 {offsets = [8, 0], sizes = [8, 288], strides = [1, 1]} : vector<32x288xf32> to vector<8x288xf32>
    %35 = vector.extract_strided_slice %32 {offsets = [16, 0], sizes = [8, 288], strides = [1, 1]} : vector<32x288xf32> to vector<8x288xf32>
    %36 = vector.extract_strided_slice %32 {offsets = [24, 0], sizes = [8, 288], strides = [1, 1]} : vector<32x288xf32> to vector<8x288xf32>
    %c0_34 = arith.constant 0 : index
    %c0_35 = arith.constant 0 : index
    %c0_36 = arith.constant 0 : index
    %37 = vector.load %arg7[%c0_34, %c0_35, %c0_36] : memref<1x8x288xf32, #tpu.memory_space<vmem>>, vector<1x8x288xf32>
    %38 = vector.shape_cast %37 : vector<1x8x288xf32> to vector<8x288xf32>
    %c0_37 = arith.constant 0 : index
    %c0_38 = arith.constant 0 : index
    %39 = vector.load %arg4[%c0_37, %c0_38] : memref<8x288xf32, #tpu.memory_space<vmem>>, vector<8x288xf32>
    %40 = arith.mulf %39, %38 : vector<8x288xf32>
    %41 = arith.addf %33, %40 : vector<8x288xf32>
    %42 = arith.negf %41 : vector<8x288xf32>
    %43 = math.exp %42 : vector<8x288xf32>
    %cst_39 = arith.constant 1.000000e+00 : f32
    %44 = vector.broadcast %cst_39 : f32 to vector<8x288xf32>
    %45 = arith.addf %44, %43 : vector<8x288xf32>
    %46 = arith.divf %44, %45 : vector<8x288xf32>
    %c0_40 = arith.constant 0 : index
    %c0_41 = arith.constant 0 : index
    %47 = vector.load %arg5[%c0_40, %c0_41] : memref<8x288xf32, #tpu.memory_space<vmem>>, vector<8x288xf32>
    %48 = arith.mulf %47, %38 : vector<8x288xf32>
    %49 = arith.addf %34, %48 : vector<8x288xf32>
    %50 = arith.negf %49 : vector<8x288xf32>
    %51 = math.exp %50 : vector<8x288xf32>
    %cst_42 = arith.constant 1.000000e+00 : f32
    %52 = vector.broadcast %cst_42 : f32 to vector<8x288xf32>
    %53 = arith.addf %52, %51 : vector<8x288xf32>
    %54 = arith.divf %52, %53 : vector<8x288xf32>
    %55 = arith.mulf %54, %38 : vector<8x288xf32>
    %56 = math.tanh %35 : vector<8x288xf32>
    %57 = arith.mulf %46, %56 : vector<8x288xf32>
    %58 = arith.addf %55, %57 : vector<8x288xf32>
    %c0_43 = arith.constant 0 : index
    %c0_44 = arith.constant 0 : index
    %59 = vector.load %arg6[%c0_43, %c0_44] : memref<8x288xf32, #tpu.memory_space<vmem>>, vector<8x288xf32>
    %60 = arith.mulf %59, %58 : vector<8x288xf32>
    %61 = arith.addf %36, %60 : vector<8x288xf32>
    %62 = arith.negf %61 : vector<8x288xf32>
    %63 = math.exp %62 : vector<8x288xf32>
    %cst_45 = arith.constant 1.000000e+00 : f32
    %64 = vector.broadcast %cst_45 : f32 to vector<8x288xf32>
    %65 = arith.addf %64, %63 : vector<8x288xf32>
    %66 = arith.divf %64, %65 : vector<8x288xf32>
    %67 = math.tanh %58 : vector<8x288xf32>
    %68 = arith.mulf %66, %67 : vector<8x288xf32>
    %c0_46 = arith.constant 0 : index
    %c0_47 = arith.constant 0 : index
    %c0_48 = arith.constant 0 : index
    %69 = vector.load %arg8[%c0_46, %c0_47, %c0_48] : memref<1x8x288xf32, #tpu.memory_space<vmem>>, vector<1x8x288xf32>
    %70 = vector.shape_cast %69 : vector<1x8x288xf32> to vector<8x288xf32>
    %71 = vector.shape_cast %68 : vector<8x288xf32> to vector<1x8x288xf32>
    tpu.vector_store %arg8[%c0_46, %c0_47, %c0_48], %71 {strides = array<i32>} : memref<1x8x288xf32, #tpu.memory_space<vmem>>, vector<1x8x288xf32>,
    %c0_49 = arith.constant 0 : index
    %c0_50 = arith.constant 0 : index
    %c0_51 = arith.constant 0 : index
    %72 = vector.load %arg9[%c0_49, %c0_50, %c0_51] : memref<1x8x288xf32, #tpu.memory_space<vmem>>, vector<1x8x288xf32>
    %73 = vector.shape_cast %72 : vector<1x8x288xf32> to vector<8x288xf32>
    %74 = vector.shape_cast %58 : vector<8x288xf32> to vector<1x8x288xf32>
    tpu.vector_store %arg9[%c0_49, %c0_50, %c0_51], %74 {strides = array<i32>} : memref<1x8x288xf32, #tpu.memory_space<vmem>>, vector<1x8x288xf32>,
    return
  }
  func.func @transform_0(%arg0: i32) -> (i32, i32, i32) {
    %c0_i32 = arith.constant 0 : i32
    %c0_i32_0 = arith.constant 0 : i32
    %c0_i32_1 = arith.constant 0 : i32
    return %arg0, %c0_i32, %c0_i32_0 : i32, i32, i32
  }
  func.func @transform_1(%arg0: i32) -> (i32, i32) {
    %c0_i32 = arith.constant 0 : i32
    %c0_i32_0 = arith.constant 0 : i32
    %c0_i32_1 = arith.constant 0 : i32
    return %c0_i32, %c0_i32_0 : i32, i32
  }
  func.func @transform_2(%arg0: i32) -> (i32, i32) {
    %c0_i32 = arith.constant 0 : i32
    %c0_i32_0 = arith.constant 0 : i32
    %c0_i32_1 = arith.constant 0 : i32
    return %c0_i32, %c0_i32_0 : i32, i32
  }
  func.func @transform_3(%arg0: i32) -> (i32, i32) {
    %c0_i32 = arith.constant 0 : i32
    %c0_i32_0 = arith.constant 0 : i32
    %c0_i32_1 = arith.constant 0 : i32
    return %c0_i32, %c0_i32_0 : i32, i32
  }
  func.func @transform_4(%arg0: i32) -> (i32, i32) {
    %c0_i32 = arith.constant 0 : i32
    %c0_i32_0 = arith.constant 0 : i32
    %c0_i32_1 = arith.constant 0 : i32
    return %c0_i32, %c0_i32_0 : i32, i32
  }
  func.func @transform_5(%arg0: i32) -> (i32, i32) {
    %c0_i32 = arith.constant 0 : i32
    %c0_i32_0 = arith.constant 0 : i32
    %c0_i32_1 = arith.constant 0 : i32
    return %c0_i32, %c0_i32_0 : i32, i32
  }
  func.func @transform_6(%arg0: i32) -> (i32, i32, i32) {
    %c0_i32 = arith.constant 0 : i32
    %c0_i32_0 = arith.constant 0 : i32
    %c0_i32_1 = arith.constant 0 : i32
    return %arg0, %c0_i32, %c0_i32_0 : i32, i32, i32
  }
  func.func @transform_7(%arg0: i32) -> (i32, i32, i32) {
    %c0_i32 = arith.constant 0 : i32
    %c0_i32_0 = arith.constant 0 : i32
    %c0_i32_1 = arith.constant 0 : i32
    return %arg0, %c0_i32, %c0_i32_0 : i32, i32, i32
  }
  func.func @transform_8(%arg0: i32) -> (i32, i32, i32) {
    %c0_i32 = arith.constant 0 : i32
    %c0_i32_0 = arith.constant 0 : i32
    %c0_i32_1 = arith.constant 0 : i32
    return %arg0, %c0_i32, %c0_i32_0 : i32, i32, i32
  }
}

</mosaic_0001>

<llo_original>
// kernel: tpu_custom_call.1
$region0: #{tpu_custom_call.1}
  #allocation0 [shape = 'u32[]', space=smem, size = 0x4, offset = 0x4, fixed_abs, tag = 'smem constant byte address 0x4 - core index']
  #allocation1 [shape = 'u32[144,128]{1,0:T(1,128)}', space=vmem, size = 0x12000, scoped, tag = 'internal scratch']
  #allocation2 [shape = 'bf16[144,288]{1,0:T(16,128)(2,1)}', space=vmem, size = 0x1b000, scoped, tag = 'scratch operand']
  %s0 = inlined_call_operand.hbm [shape: bf16[2,16,342], index: 0, kind: input, shape index: {}]
  %s1 = inlined_call_operand.hbm [shape: bf16[32,144], index: 1, kind: input, shape index: {}]
  %s2 = inlined_call_operand.vmem [shape: f32[32,1], index: 2, kind: input, shape index: {}]
  %s3 = inlined_call_operand.hbm [shape: f32[8,288], index: 3, kind: input, shape index: {}]
  %s4 = inlined_call_operand.hbm [shape: f32[8,288], index: 4, kind: input, shape index: {}]
  %s5 = inlined_call_operand.hbm [shape: f32[8,288], index: 5, kind: input, shape index: {}]
  %s6 = inlined_call_operand.vmem [shape: f32[2,8,288], index: 6, kind: input, shape index: {}]
  %s7 = inlined_call_operand.hbm [shape: f32[2,8,288], index: 7, kind: output, shape index: {0}]
  %s8 = inlined_call_operand.hbm [shape: f32[2,8,288], index: 8, kind: output, shape index: {1}]
  %9 = xla_tuple %s7, %s8
  %s10 = sld [smem:[#allocation0]]
  $region89: #{tpu_custom_call.1} parent=0
    _
  %s12 = ssub.s32 1, %s10
  %s13 = scalar_select 0, %s12, %s10
  $region1: #{tpu_custom_call.1} parent=0
    #allocation3 [shape = 'u8[24576]{0}', space=vmem, size = 0x6000, scoped, tag = 'input window, operand 0']
    #allocation4 [shape = 's32[2]{0}', space=sflag, size = 0x8, scoped, tag = 'scoped memory for tpu_custom_call.1']
    #allocation5 [shape = 's32[2]{0}', space=sflag, size = 0x8, scoped, tag = 'scoped memory for tpu_custom_call.1']
    #allocation6 [shape = 'u8[16384]{0}', space=vmem, size = 0x4000, scoped, tag = 'input window, operand 1, single buffered']
    #allocation7 [shape = 's32[1]{0}', space=sflag, size = 0x4, scoped, tag = 'scoped memory for tpu_custom_call.1']
    #allocation8 [shape = 'u8[12288]{0}', space=vmem, size = 0x3000, scoped, tag = 'input window, operand 3, single buffered']
    #allocation9 [shape = 'u8[12288]{0}', space=vmem, size = 0x3000, scoped, tag = 'input window, operand 4, single buffered']
    #allocation10 [shape = 's32[1]{0}', space=sflag, size = 0x4, scoped, tag = 'scoped memory for tpu_custom_call.1']
    #allocation11 [shape = 'u8[12288]{0}', space=vmem, size = 0x3000, scoped, tag = 'input window, operand 5, single buffered']
    #allocation12 [shape = 'u8[24576]{0}', space=vmem, size = 0x6000, scoped, tag = 'output window, operand 0']
    #allocation13 [shape = 'u8[24576]{0}', space=vmem, size = 0x6000, scoped, tag = 'output window, operand 1']
    #allocation14 [shape = 's32[2]{0}', space=sflag, size = 0x8, scoped, tag = 'scoped memory for tpu_custom_call.1']
    %14 = vsyncpa [#allocation4], 0
    %s15 = scalar_lea.sflag [#allocation4], 1
    %16 = vsyncpa %s15, 0
    %17 = vsyncpa [#allocation7], 0
    %18 = vsyncpa [#allocation10], 0
    %19 = vsyncpa [#allocation5], 0
    %s20 = scalar_lea.sflag [#allocation5], 1
    %21 = vsyncpa %s20, 0
    %22 = vsyncpa [#allocation14], 0
    %s23 = scalar_lea.sflag [#allocation14], 1
    %24 = vsyncpa %s23, 0
    loop: start=0, step=1, limit=4
    $region2: #{tpu_custom_call.1} parent=1 // loop_pre_header
      _
    $region3: #{tpu_custom_call.1} parent=1 // loop_header
      %s26 = sphi 0, %s30
      %p27 = scmp.ge.s32.totalorder %s26, 4
      %s36 = sphi 0, %s38
      %s39 = sphi 0, %s36
      %s40 = sphi 0, %s39
      %s56 = sphi 0, %s40
      %s60 = sphi 0, %s60
      %s62 = sphi 0, %s60
      %s63 = sphi 0, %s62
      %s77 = sphi 0, %s63
      %s81 = sphi 0, %s81
      %s83 = sphi 0, %s81
      %s84 = sphi 0, %s83
      %s98 = sphi 0, %s84
      %s102 = sphi 0, %s102
      %s104 = sphi 0, %s102
      %s105 = sphi 0, %s104
      %s119 = sphi 0, %s105
      %s123 = sphi 0, %s123
      %s125 = sphi 0, %s123
      %s126 = sphi 0, %s125
      %s140 = sphi 0, %s126
      %s144 = sphi 0, %s144
      %s146 = sphi 0, %s144
      %s147 = sphi 0, %s146
      %s161 = sphi 0, %s147
      %s167 = sphi 0, %s169
      %s170 = sphi 0, %s167
      %s171 = sphi 0, %s170
      %s187 = sphi 0, %s171
      %s193 = sphi 0, %s195
      %s196 = sphi 0, %s193
      %s197 = sphi 0, %s196
      %s213 = sphi 0, %s197
      %s219 = sphi 0, %s221
      %s222 = sphi 0, %s219
      %s223 = sphi 0, %s222
      %s239 = sphi 0, %s223
    $region4: #{tpu_custom_call.1} parent=1 // loop_header_branch
      %29 = sbr.rel (%p27) target = $region8
    $region5: #{tpu_custom_call.1} parent=1 // loop_body
      %s31 = ssub.s32 %s26, 1
      %s32 = ssub.s32 %s26, 2
      %s33 = sadd.s32 %s26, 1
      %s34 = ssub.s32 %s26, %s33
      %p35 = scmp.eq.s32.totalorder %s34, 0
      %s37 = sadd.s32 %s36, 1
      %s38 = scalar_select %p35, %s36, %s37
      %p41 = pneg %p35
      %p42 = scmp.eq.s32.totalorder %s26, 1
      %p43 = por %p41, %p42
      %p44 = scmp.ne.s32.totalorder %s36, %s39
      %p45 = scmp.eq.s32.totalorder %s26, 0
      %p46 = por %p44, %p45
      %p47 = scmp.ne.s32.totalorder %s36, %s39
      %p48 = scmp.eq.s32.totalorder %s31, 1
      %p49 = por %p47, %p48
      %p50 = scmp.ne.s32.totalorder %s39, %s40
      %p51 = scmp.eq.s32.totalorder %s31, 0
      %p52 = por %p50, %p51
      %p53 = scmp.ne.s32.totalorder %s39, %s40
      %p54 = scmp.eq.s32.totalorder %s32, 1
      %p55 = por %p53, %p54
      %p57 = scmp.ne.s32.totalorder %s40, %s56
      %p58 = scmp.eq.s32.totalorder %s32, 0
      %p59 = por %p57, %p58
      %s61 = sadd.s32 %s60, 1
      %p64 = scmp.eq.s32.totalorder %s26, 1
      %p65 = scmp.ne.s32.totalorder %s60, %s62
      %p66 = scmp.eq.s32.totalorder %s26, 0
      %p67 = por %p65, %p66
      %p68 = scmp.ne.s32.totalorder %s60, %s62
      %p69 = scmp.eq.s32.totalorder %s31, 1
      %p70 = por %p68, %p69
      %p71 = scmp.ne.s32.totalorder %s62, %s63
      %p72 = scmp.eq.s32.totalorder %s31, 0
      %p73 = por %p71, %p72
      %p74 = scmp.ne.s32.totalorder %s62, %s63
      %p75 = scmp.eq.s32.totalorder %s32, 1
      %p76 = por %p74, %p75
      %p78 = scmp.ne.s32.totalorder %s63, %s77
      %p79 = scmp.eq.s32.totalorder %s32, 0
      %p80 = por %p78, %p79
      %s82 = sadd.s32 %s81, 1
      %p85 = scmp.eq.s32.totalorder %s26, 1
      %p86 = scmp.ne.s32.totalorder %s81, %s83
      %p87 = scmp.eq.s32.totalorder %s26, 0
      %p88 = por %p86, %p87
      %p89 = scmp.ne.s32.totalorder %s81, %s83
      %p90 = scmp.eq.s32.totalorder %s31, 1
      %p91 = por %p89, %p90
      %p92 = scmp.ne.s32.totalorder %s83, %s84
      %p93 = scmp.eq.s32.totalorder %s31, 0
      %p94 = por %p92, %p93
      %p95 = scmp.ne.s32.totalorder %s83, %s84
      %p96 = scmp.eq.s32.totalorder %s32, 1
      %p97 = por %p95, %p96
      %p99 = scmp.ne.s32.totalorder %s84, %s98
      %p100 = scmp.eq.s32.totalorder %s32, 0
      %p101 = por %p99, %p100
      %s103 = sadd.s32 %s102, 1
      %p106 = scmp.eq.s32.totalorder %s26, 1
      %p107 = scmp.ne.s32.totalorder %s102, %s104
      %p108 = scmp.eq.s32.totalorder %s26, 0
      %p109 = por %p107, %p108
      %p110 = scmp.ne.s32.totalorder %s102, %s104
      %p111 = scmp.eq.s32.totalorder %s31, 1
      %p112 = por %p110, %p111
      %p113 = scmp.ne.s32.totalorder %s104, %s105
      %p114 = scmp.eq.s32.totalorder %s31, 0
      %p115 = por %p113, %p114
      %p116 = scmp.ne.s32.totalorder %s104, %s105
      %p117 = scmp.eq.s32.totalorder %s32, 1
      %p118 = por %p116, %p117
      %p120 = scmp.ne.s32.totalorder %s105, %s119
      %p121 = scmp.eq.s32.totalorder %s32, 0
      %p122 = por %p120, %p121
      %s124 = sadd.s32 %s123, 1
      %p127 = scmp.eq.s32.totalorder %s26, 1
      %p128 = scmp.ne.s32.totalorder %s123, %s125
      %p129 = scmp.eq.s32.totalorder %s26, 0
      %p130 = por %p128, %p129
      %p131 = scmp.ne.s32.totalorder %s123, %s125
      %p132 = scmp.eq.s32.totalorder %s31, 1
      %p133 = por %p131, %p132
      %p134 = scmp.ne.s32.totalorder %s125, %s126
      %p135 = scmp.eq.s32.totalorder %s31, 0
      %p136 = por %p134, %p135
      %p137 = scmp.ne.s32.totalorder %s125, %s126
      %p138 = scmp.eq.s32.totalorder %s32, 1
      %p139 = por %p137, %p138
      %p141 = scmp.ne.s32.totalorder %s126, %s140
      %p142 = scmp.eq.s32.totalorder %s32, 0
      %p143 = por %p141, %p142
      %s145 = sadd.s32 %s144, 1
      %p148 = scmp.eq.s32.totalorder %s26, 1
      %p149 = scmp.ne.s32.totalorder %s144, %s146
      %p150 = scmp.eq.s32.totalorder %s26, 0
      %p151 = por %p149, %p150
      %p152 = scmp.ne.s32.totalorder %s144, %s146
      %p153 = scmp.eq.s32.totalorder %s31, 1
      %p154 = por %p152, %p153
      %p155 = scmp.ne.s32.totalorder %s146, %s147
      %p156 = scmp.eq.s32.totalorder %s31, 0
      %p157 = por %p155, %p156
      %p158 = scmp.ne.s32.totalorder %s146, %s147
      %p159 = scmp.eq.s32.totalorder %s32, 1
      %p160 = por %p158, %p159
      %p162 = scmp.ne.s32.totalorder %s147, %s161
      %p163 = scmp.eq.s32.totalorder %s32, 0
      %p164 = por %p162, %p163
      %s165 = ssub.s32 %s26, %s33
      %p166 = scmp.eq.s32.totalorder %s165, 0
      %s168 = sadd.s32 %s167, 1
      %s169 = scalar_select %p166, %s167, %s168
      %p172 = pneg %p166
      %p173 = scmp.eq.s32.totalorder %s26, 1
      %p174 = por %p172, %p173
      %p175 = scmp.ne.s32.totalorder %s167, %s170
      %p176 = scmp.eq.s32.totalorder %s26, 0
      %p177 = por %p175, %p176
      %p178 = scmp.ne.s32.totalorder %s167, %s170
      %p179 = scmp.eq.s32.totalorder %s31, 1
      %p180 = por %p178, %p179
      %p181 = scmp.ne.s32.totalorder %s170, %s171
      %p182 = scmp.eq.s32.totalorder %s31, 0
      %p183 = por %p181, %p182
      %p184 = scmp.ne.s32.totalorder %s170, %s171
      %p185 = scmp.eq.s32.totalorder %s32, 1
      %p186 = por %p184, %p185
      %p188 = scmp.ne.s32.totalorder %s171, %s187
      %p189 = scmp.eq.s32.totalorder %s32, 0
      %p190 = por %p188, %p189
      %s191 = ssub.s32 %s26, %s33
      %p192 = scmp.eq.s32.totalorder %s191, 0
      %s194 = sadd.s32 %s193, 1
      %s195 = scalar_select %p192, %s193, %s194
      %p198 = pneg %p192
      %p199 = scmp.eq.s32.totalorder %s26, 1
      %p200 = por %p198, %p199
      %p201 = scmp.ne.s32.totalorder %s193, %s196
      %p202 = scmp.eq.s32.totalorder %s26, 0
      %p203 = por %p201, %p202
      %p204 = scmp.ne.s32.totalorder %s193, %s196
      %p205 = scmp.eq.s32.totalorder %s31, 1
      %p206 = por %p204, %p205
      %p207 = scmp.ne.s32.totalorder %s196, %s197
      %p208 = scmp.eq.s32.totalorder %s31, 0
      %p209 = por %p207, %p208
      %p210 = scmp.ne.s32.totalorder %s196, %s197
      %p211 = scmp.eq.s32.totalorder %s32, 1
      %p212 = por %p210, %p211
      %p214 = scmp.ne.s32.totalorder %s197, %s213
      %p215 = scmp.eq.s32.totalorder %s32, 0
      %p216 = por %p214, %p215
      %s217 = ssub.s32 %s26, %s33
      %p218 = scmp.eq.s32.totalorder %s217, 0
      %s220 = sadd.s32 %s219, 1
      %s221 = scalar_select %p218, %s219, %s220
      %p224 = pneg %p218
      %p225 = scmp.eq.s32.totalorder %s26, 1
      %p226 = por %p224, %p225
      %p227 = scmp.ne.s32.totalorder %s219, %s222
      %p228 = scmp.eq.s32.totalorder %s26, 0
      %p229 = por %p227, %p228
      %p230 = scmp.ne.s32.totalorder %s219, %s222
      %p231 = scmp.eq.s32.totalorder %s31, 1
      %p232 = por %p230, %p231
      %p233 = scmp.ne.s32.totalorder %s222, %s223
      %p234 = scmp.eq.s32.totalorder %s31, 0
      %p235 = por %p233, %p234
      %p236 = scmp.ne.s32.totalorder %s222, %s223
      %p237 = scmp.eq.s32.totalorder %s32, 1
      %p238 = por %p236, %p237
      %p240 = scmp.ne.s32.totalorder %s223, %s239
      %p241 = scmp.eq.s32.totalorder %s32, 0
      %p242 = por %p240, %p241
      %p243 = scmp.le.s32.totalorder 1, %s26
      %p244 = scmp.lt.s32.totalorder %s26, 3
      %p245 = pnand %p243, %p244
      %p246 = pneg %p245
      // Predicated region
      $region9: #{tpu_custom_call.1} parent=5 // pred_check
        _
      $region10: #{tpu_custom_call.1} parent=5 // pred_check_branch
        %248 = sbr.rel (%p245) target = $region12
      $region11: #{tpu_custom_call.1} parent=5 // pred_region
        %s249 = ssub.s32 %s26, 1
        // Predicated region
        $region13: #{tpu_custom_call.1} parent=11 // pred_check
          %p250 = pneg %p73
        $region14: #{tpu_custom_call.1} parent=11 // pred_check_branch
          %252 = sbr.rel (%p250) target = $region16
        $region15: #{tpu_custom_call.1} parent=11 // pred_region
          %s254 = ssub.s32 512, 512
          %255 = vsyncadd [#allocation7], %s254
          %s256 = sshll.u32 [#allocation6], 4
          %s257 = int_to_ptr.vmem [resolvable:$true] %s256
          %262 = dma.hbm_to_vmem [thread:$0]  %s1, 512, %s257, [#allocation7], 128, 128, 8
        $region16: #{tpu_custom_call.1} parent=11 // pred_fallthru
          _
        // Predicated region
        $region17: #{tpu_custom_call.1} parent=11 // pred_check
          %p263 = pneg %p94
        $region18: #{tpu_custom_call.1} parent=11 // pred_check_branch
          %265 = sbr.rel (%p263) target = $region20
        $region19: #{tpu_custom_call.1} parent=11 // pred_region
          _
        $region20: #{tpu_custom_call.1} parent=11 // pred_fallthru
          _
        // Predicated region
        $region21: #{tpu_custom_call.1} parent=11 // pred_check
          %p266 = pneg %p115
        $region22: #{tpu_custom_call.1} parent=11 // pred_check_branch
          %268 = sbr.rel (%p266) target = $region24
        $region23: #{tpu_custom_call.1} parent=11 // pred_region
          %s270 = ssub.s32 384, 384
          %271 = vsyncadd [#allocation7], %s270
          %s273 = sshll.u32 [#allocation8], 4
          %s274 = int_to_ptr.vmem [resolvable:$true] %s273
          %276 = dma.hbm_to_vmem [thread:$0]  %s3, 384, %s274, [#allocation7]
        $region24: #{tpu_custom_call.1} parent=11 // pred_fallthru
          _
        // Predicated region
        $region25: #{tpu_custom_call.1} parent=11 // pred_check
          %p277 = pneg %p136
        $region26: #{tpu_custom_call.1} parent=11 // pred_check_branch
          %279 = sbr.rel (%p277) target = $region28
        $region27: #{tpu_custom_call.1} parent=11 // pred_region
          %s281 = ssub.s32 384, 384
          %282 = vsyncadd [#allocation10], %s281
          %s284 = sshll.u32 [#allocation9], 4
          %s285 = int_to_ptr.vmem [resolvable:$true] %s284
          %287 = dma.hbm_to_vmem [thread:$0]  %s4, 384, %s285, [#allocation10]
        $region28: #{tpu_custom_call.1} parent=11 // pred_fallthru
          _
        // Predicated region
        $region29: #{tpu_custom_call.1} parent=11 // pred_check
          %p288 = pneg %p157
        $region30: #{tpu_custom_call.1} parent=11 // pred_check_branch
          %290 = sbr.rel (%p288) target = $region32
        $region31: #{tpu_custom_call.1} parent=11 // pred_region
          %s292 = ssub.s32 384, 384
          %293 = vsyncadd [#allocation10], %s292
          %s295 = sshll.u32 [#allocation11], 4
          %s296 = int_to_ptr.vmem [resolvable:$true] %s295
          %298 = dma.hbm_to_vmem [thread:$0]  %s5, 384, %s296, [#allocation10]
        $region32: #{tpu_custom_call.1} parent=11 // pred_fallthru
          _
      $region12: #{tpu_custom_call.1} parent=5 // pred_fallthru
        _
      %p299 = scmp.lt.s32.totalorder %s26, 2
      // Predicated region
      $region33: #{tpu_custom_call.1} parent=5 // pred_check
        %p300 = pneg %p299
      $region34: #{tpu_custom_call.1} parent=5 // pred_check_branch
        %302 = sbr.rel (%p300) target = $region36
      $region35: #{tpu_custom_call.1} parent=5 // pred_region
        // Predicated region
        $region37: #{tpu_custom_call.1} parent=35 // pred_check
          %p303 = pneg %p46
        $region38: #{tpu_custom_call.1} parent=35 // pred_check_branch
          %305 = sbr.rel (%p303) target = $region40
        $region39: #{tpu_custom_call.1} parent=35 // pred_region
          %s306 = sand.u32 %s36, 1
          %s307 = scalar_lea.sflag [#allocation4], %s306
          %s308 = sand.u32 %s36, 1
          %s309 = smul.addr %s308, 24
          %s310 = scalar_lea.vmem [#allocation3], %s309
          %s312 = ssub.s32 384, 384
          %313 = vsyncadd %s307, %s312
          %s314 = smul.addr %s26, 6
          %s315 = smul.addr %s314, 64
          %s316 = scalar_lea.hbm %s0, %s315
          %s317 = sshll.u32 %s310, 4
          %s318 = int_to_ptr.vmem [resolvable:$true] %s317
          %323 = dma.hbm_to_vmem [thread:$0]  %s316, 384, %s318, %s307, 192, 192, 12
        $region40: #{tpu_custom_call.1} parent=35 // pred_fallthru
          _
        // Predicated region
        $region41: #{tpu_custom_call.1} parent=35 // pred_check
          %p324 = pneg %p177
        $region42: #{tpu_custom_call.1} parent=35 // pred_check_branch
          %326 = sbr.rel (%p324) target = $region44
        $region43: #{tpu_custom_call.1} parent=35 // pred_region
          %p327 = scmp.lt.s32.totalorder %s26, 1
          %s328 = scalar_select %p327, %s26, 1
          %s329 = smul.addr %s328, 3
          %s330 = smul.addr %s329, 8
          %s331 = scalar_lea.vmem %s6, %s330
        $region44: #{tpu_custom_call.1} parent=35 // pred_fallthru
          _
      $region36: #{tpu_custom_call.1} parent=5 // pred_fallthru
        _
      %p332 = scmp.le.s32.totalorder 1, %s26
      %p333 = scmp.lt.s32.totalorder %s26, 3
      %p334 = pnand %p332, %p333
      %p335 = pneg %p334
      // Predicated region
      $region45: #{tpu_custom_call.1} parent=5 // pred_check
        _
      $region46: #{tpu_custom_call.1} parent=5 // pred_check_branch
        %337 = sbr.rel (%p334) target = $region48
      $region47: #{tpu_custom_call.1} parent=5 // pred_region
        %s338 = ssub.s32 %s26, 1
        %s339 = sand.u32 %s39, 1
        %s340 = scalar_lea.sflag [#allocation4], %s339
        %s341 = sand.u32 %s39, 1
        %s342 = smul.addr %s341, 24
        %s343 = scalar_lea.vmem [#allocation3], %s342
        // Predicated region
        $region49: #{tpu_custom_call.1} parent=47 // pred_check
          %p344 = pneg %p52
        $region50: #{tpu_custom_call.1} parent=47 // pred_check_branch
          %346 = sbr.rel (%p344) target = $region52
        $region51: #{tpu_custom_call.1} parent=47 // pred_region
          %347 = dma.done %s340, 384
        $region52: #{tpu_custom_call.1} parent=47 // pred_fallthru
          _
        // Predicated region
        $region53: #{tpu_custom_call.1} parent=47 // pred_check
          %p348 = pneg %p73
        $region54: #{tpu_custom_call.1} parent=47 // pred_check_branch
          %350 = sbr.rel (%p348) target = $region56
        $region55: #{tpu_custom_call.1} parent=47 // pred_region
          %351 = dma.done [#allocation7], 512
        $region56: #{tpu_custom_call.1} parent=47 // pred_fallthru
          _
        // Predicated region
        $region57: #{tpu_custom_call.1} parent=47 // pred_check
          %p352 = pneg %p115
        $region58: #{tpu_custom_call.1} parent=47 // pred_check_branch
          %354 = sbr.rel (%p352) target = $region60
        $region59: #{tpu_custom_call.1} parent=47 // pred_region
          %355 = dma.done [#allocation7], 384
        $region60: #{tpu_custom_call.1} parent=47 // pred_fallthru
          _
        // Predicated region
        $region61: #{tpu_custom_call.1} parent=47 // pred_check
          %p356 = pneg %p136
        $region62: #{tpu_custom_call.1} parent=47 // pred_check_branch
          %358 = sbr.rel (%p356) target = $region64
        $region63: #{tpu_custom_call.1} parent=47 // pred_region
          %359 = dma.done [#allocation10], 384
        $region64: #{tpu_custom_call.1} parent=47 // pred_fallthru
          _
        // Predicated region
        $region65: #{tpu_custom_call.1} parent=47 // pred_check
          %p360 = pneg %p157
        $region66: #{tpu_custom_call.1} parent=47 // pred_check_branch
          %362 = sbr.rel (%p360) target = $region68
        $region67: #{tpu_custom_call.1} parent=47 // pred_region
          %363 = dma.done [#allocation10], 384
        $region68: #{tpu_custom_call.1} parent=47 // pred_fallthru
          _
        %s364 = sand.u32 %s39, 1
        %s365 = scalar_lea.sflag [#allocation4], %s364
        %s366 = sand.u32 %s39, 1
        %s367 = smul.addr %s366, 24
        %s368 = scalar_lea.vmem [#allocation3], %s367
        %p369 = pneg %p52
        %p370 = pneg %p49
        %p371 = pneg %p73
        %p372 = pneg %p70
        %p373 = pneg %p94
        %p374 = pneg %p91
        %p375 = pneg %p115
        %p376 = pneg %p112
        %p377 = pneg %p136
        %p378 = pneg %p133
        %p379 = pneg %p157
        %p380 = pneg %p154
        %p381 = scmp.lt.s32.totalorder %s31, 1
        %s382 = scalar_select %p381, %s31, 1
        %s383 = smul.addr %s382, 3
        %s384 = smul.addr %s383, 8
        %s385 = scalar_lea.vmem %s6, %s384
        %p386 = pneg %p183
        %p387 = pneg %p180
        %p388 = pneg %p209
        %p389 = pneg %p206
        %s390 = sand.u32 %s196, 1
        %s391 = scalar_lea.sflag [#allocation5], %s390
        %s392 = sand.u32 %s196, 1
        %s393 = smul.addr %s392, 24
        %s394 = scalar_lea.vmem [#allocation12], %s393
        %p395 = pneg %p235
        %p396 = pneg %p232
        %s397 = sand.u32 %s222, 1
        %s398 = scalar_lea.sflag [#allocation14], %s397
        %s399 = sand.u32 %s222, 1
        %s400 = smul.addr %s399, 24
        %s401 = scalar_lea.vmem [#allocation13], %s400
        %p402 = scmp.lt.s32.totalorder %s31, 1
        %s403 = scalar_select %p402, %s31, 1
        %s404 = smul.addr %s403, 3
        %s405 = smul.addr %s404, 8
        %s406 = scalar_lea.vmem %s6, %s405
        %v408 = vld [vmem:[%s343] sm:$0xff]
        %v409 = vld [vmem:[%s343 + $0x8] sm:$0xf]
        %v410 = vld [vmem:[%s343 + $0xc] sm:$0xff]
        %v411 = vld [vmem:[%s343 + $0x14] sm:$0xf]
        %v416 = vunpack.c.l.b16 %v408
        %v417 = vunpack.c.h.b16 %v408
        %v418 = vunpack.c.l.b16 %v409
        %v419 = vunpack.c.l.b16 %v410
        %v420 = vunpack.c.h.b16 %v410
        %v421 = vunpack.c.l.b16 %v411
        %v422 = vpack.c.b16 %v419, %v416
        %v423 = vpack.c.b16 %v420, %v417
        %v424 = vpack.c.b16 %v421, %v418
        %428 = vst [vmem:[#allocation2] sm:$0xff] %v422
        %429 = vst [vmem:[#allocation2 + $0x8] sm:$0xff] %v423
        %vm430 = vcmask 261120
        %431 = vst.msk [vmem:[#allocation2 + $0x10] sm:$0xff] %vm430, %v424
        %v432 = vld [vmem:[%s343] sm:$0xff]
        %v433 = vld [vmem:[%s343 + $0x8] sm:$0xf]
        %v434 = vld [vmem:[%s343 + $0xc] sm:$0xff]
        %v435 = vld [vmem:[%s343 + $0x14] sm:$0xf]
        %v440 = vunpack.c.l.b16 %v432
        %v441 = vunpack.c.h.b16 %v432
        %v442 = vunpack.c.l.b16 %v433
        %v443 = vunpack.c.l.b16 %v434
        %v444 = vunpack.c.h.b16 %v434
        %v445 = vunpack.c.l.b16 %v435
        %v446 = vpack.c.b16 %v443, %v440
        %v447 = vpack.c.b16 %v444, %v441
        %v448 = vpack.c.b16 %v445, %v442
        %449 = vrot.lane.b32.xlu0 %v446, 127
        %v450 = vpop.permute.xlu0 %449
        %451 = vrot.lane.b32.xlu0 %v447, 127
        %v452 = vpop.permute.xlu0 %451
        %453 = vrot.lane.b32.xlu0 %v448, 127
        %v454 = vpop.permute.xlu0 %453
        %vm455 = vcmask 1039360
        %v456 = vsel %vm455, %v450, %v452
        %v457 = vsel %vm455, %v452, %v454
        %461 = vst [vmem:[#allocation2 + $0x18] sm:$0xff] %v456
        %462 = vst [vmem:[#allocation2 + $0x20] sm:$0xff] %v457
        %463 = vst.msk [vmem:[#allocation2 + $0x28] sm:$0xff] %vm430, %v454
        %v464 = vld [vmem:[%s343] sm:$0xff]
        %v465 = vld [vmem:[%s343 + $0x8] sm:$0xf]
        %v466 = vld [vmem:[%s343 + $0xc] sm:$0xff]
        %v467 = vld [vmem:[%s343 + $0x14] sm:$0xf]
        %v472 = vunpack.c.l.b16 %v464
        %v473 = vunpack.c.h.b16 %v464
        %v474 = vunpack.c.l.b16 %v465
        %v475 = vunpack.c.l.b16 %v466
        %v476 = vunpack.c.h.b16 %v466
        %v477 = vunpack.c.l.b16 %v467
        %v478 = vpack.c.b16 %v475, %v472
        %v479 = vpack.c.b16 %v476, %v473
        %v480 = vpack.c.b16 %v477, %v474
        %481 = vrot.lane.b32.xlu0 %v478, 126
        %v482 = vpop.permute.xlu0 %481
        %483 = vrot.lane.b32.xlu0 %v479, 126
        %v484 = vpop.permute.xlu0 %483
        %485 = vrot.lane.b32.xlu0 %v480, 126
        %v486 = vpop.permute.xlu0 %485
        %vm487 = vcmask 1031168
        %v488 = vsel %vm487, %v482, %v484
        %v489 = vsel %vm487, %v484, %v486
        %493 = vst [vmem:[#allocation2 + $0x30] sm:$0xff] %v488
        %494 = vst [vmem:[#allocation2 + $0x38] sm:$0xff] %v489
        %495 = vst.msk [vmem:[#allocation2 + $0x40] sm:$0xff] %vm430, %v486
        %v496 = vld [vmem:[%s343] sm:$0xff]
        %v497 = vld [vmem:[%s343 + $0x8] sm:$0xf]
        %v498 = vld [vmem:[%s343 + $0xc] sm:$0xff]
        %v499 = vld [vmem:[%s343 + $0x14] sm:$0xf]
        %v504 = vunpack.c.l.b16 %v496
        %v505 = vunpack.c.h.b16 %v496
        %v506 = vunpack.c.l.b16 %v497
        %v507 = vunpack.c.l.b16 %v498
        %v508 = vunpack.c.h.b16 %v498
        %v509 = vunpack.c.l.b16 %v499
        %v510 = vpack.c.b16 %v507, %v504
        %v511 = vpack.c.b16 %v508, %v505
        %v512 = vpack.c.b16 %v509, %v506
        %513 = vrot.lane.b32.xlu0 %v510, 110
        %v514 = vpop.permute.xlu0 %513
        %515 = vrot.lane.b32.xlu0 %v511, 110
        %v516 = vpop.permute.xlu0 %515
        %517 = vrot.lane.b32.xlu0 %v512, 110
        %v518 = vpop.permute.xlu0 %517
        %vm519 = vcmask 900096
        %v520 = vsel %vm519, %v514, %v516
        %v521 = vsel %vm519, %v516, %v518
        %525 = vst [vmem:[#allocation2 + $0x48] sm:$0xff] %v520
        %526 = vst [vmem:[#allocation2 + $0x50] sm:$0xff] %v521
        %527 = vst.msk [vmem:[#allocation2 + $0x58] sm:$0xff] %vm430, %v518
        %v528 = vld [vmem:[%s343] sm:$0xff]
        %v529 = vld [vmem:[%s343 + $0x8] sm:$0xf]
        %v530 = vld [vmem:[%s343 + $0xc] sm:$0xff]
        %v531 = vld [vmem:[%s343 + $0x14] sm:$0xf]
        %v536 = vunpack.c.l.b16 %v528
        %v537 = vunpack.c.h.b16 %v528
        %v538 = vunpack.c.l.b16 %v529
        %v539 = vunpack.c.l.b16 %v530
        %v540 = vunpack.c.h.b16 %v530
        %v541 = vunpack.c.l.b16 %v531
        %v542 = vpack.c.b16 %v539, %v536
        %v543 = vpack.c.b16 %v540, %v537
        %v544 = vpack.c.b16 %v541, %v538
        %545 = vrot.lane.b32.xlu0 %v542, 109
        %v546 = vpop.permute.xlu0 %545
        %547 = vrot.lane.b32.xlu0 %v543, 109
        %v548 = vpop.permute.xlu0 %547
        %549 = vrot.lane.b32.xlu0 %v544, 109
        %v550 = vpop.permute.xlu0 %549
        %vm551 = vcmask 891904
        %v552 = vsel %vm551, %v546, %v548
        %v553 = vsel %vm551, %v548, %v550
        %557 = vst [vmem:[#allocation2 + $0x60] sm:$0xff] %v552
        %558 = vst [vmem:[#allocation2 + $0x68] sm:$0xff] %v553
        %559 = vst.msk [vmem:[#allocation2 + $0x70] sm:$0xff] %vm430, %v550
        %v560 = vld [vmem:[%s343] sm:$0xff]
        %v561 = vld [vmem:[%s343 + $0x8] sm:$0xf]
        %v562 = vld [vmem:[%s343 + $0xc] sm:$0xff]
        %v563 = vld [vmem:[%s343 + $0x14] sm:$0xf]
        %v568 = vunpack.c.l.b16 %v560
        %v569 = vunpack.c.h.b16 %v560
        %v570 = vunpack.c.l.b16 %v561
        %v571 = vunpack.c.l.b16 %v562
        %v572 = vunpack.c.h.b16 %v562
        %v573 = vunpack.c.l.b16 %v563
        %v574 = vpack.c.b16 %v571, %v568
        %v575 = vpack.c.b16 %v572, %v569
        %v576 = vpack.c.b16 %v573, %v570
        %577 = vrot.lane.b32.xlu0 %v574, 108
        %v578 = vpop.permute.xlu0 %577
        %579 = vrot.lane.b32.xlu0 %v575, 108
        %v580 = vpop.permute.xlu0 %579
        %581 = vrot.lane.b32.xlu0 %v576, 108
        %v582 = vpop.permute.xlu0 %581
        %vm583 = vcmask 883712
        %v584 = vsel %vm583, %v578, %v580
        %v585 = vsel %vm583, %v580, %v582
        %589 = vst [vmem:[#allocation2 + $0x78] sm:$0xff] %v584
        %590 = vst [vmem:[#allocation2 + $0x80] sm:$0xff] %v585
        %591 = vst.msk [vmem:[#allocation2 + $0x88] sm:$0xff] %vm430, %v582
        %v592 = vld [vmem:[%s343] sm:$0xff]
        %v593 = vld [vmem:[%s343 + $0x8] sm:$0xf]
        %v594 = vld [vmem:[%s343 + $0xc] sm:$0xff]
        %v595 = vld [vmem:[%s343 + $0x14] sm:$0xf]
        %v600 = vunpack.c.l.b16 %v592
        %v601 = vunpack.c.h.b16 %v592
        %v602 = vunpack.c.l.b16 %v593
        %v603 = vunpack.c.l.b16 %v594
        %v604 = vunpack.c.h.b16 %v594
        %v605 = vunpack.c.l.b16 %v595
        %v606 = vpack.c.b16 %v603, %v600
        %v607 = vpack.c.b16 %v604, %v601
        %v608 = vpack.c.b16 %v605, %v602
        %609 = vrot.lane.b32.xlu0 %v606, 92
        %v610 = vpop.permute.xlu0 %609
        %611 = vrot.lane.b32.xlu0 %v607, 92
        %v612 = vpop.permute.xlu0 %611
        %613 = vrot.lane.b32.xlu0 %v608, 92
        %v614 = vpop.permute.xlu0 %613
        %vm615 = vcmask 752640
        %v616 = vsel %vm615, %v610, %v612
        %v617 = vsel %vm615, %v612, %v614
        %621 = vst [vmem:[#allocation2 + $0x90] sm:$0xff] %v616
        %622 = vst [vmem:[#allocation2 + $0x98] sm:$0xff] %v617
        %623 = vst.msk [vmem:[#allocation2 + $0xa0] sm:$0xff] %vm430, %v614
        %v624 = vld [vmem:[%s343] sm:$0xff]
        %v625 = vld [vmem:[%s343 + $0x8] sm:$0xf]
        %v626 = vld [vmem:[%s343 + $0xc] sm:$0xff]
        %v627 = vld [vmem:[%s343 + $0x14] sm:$0xf]
        %v632 = vunpack.c.l.b16 %v624
        %v633 = vunpack.c.h.b16 %v624
        %v634 = vunpack.c.l.b16 %v625
        %v635 = vunpack.c.l.b16 %v626
        %v636 = vunpack.c.h.b16 %v626
        %v637 = vunpack.c.l.b16 %v627
        %v638 = vpack.c.b16 %v635, %v632
        %v639 = vpack.c.b16 %v636, %v633
        %v640 = vpack.c.b16 %v637, %v634
        %641 = vrot.lane.b32.xlu0 %v638, 91
        %v642 = vpop.permute.xlu0 %641
        %643 = vrot.lane.b32.xlu0 %v639, 91
        %v644 = vpop.permute.xlu0 %643
        %645 = vrot.lane.b32.xlu0 %v640, 91
        %v646 = vpop.permute.xlu0 %645
        %vm647 = vcmask 744448
        %v648 = vsel %vm647, %v642, %v644
        %v649 = vsel %vm647, %v644, %v646
        %653 = vst [vmem:[#allocation2 + $0xa8] sm:$0xff] %v648
        %654 = vst [vmem:[#allocation2 + $0xb0] sm:$0xff] %v649
        %655 = vst.msk [vmem:[#allocation2 + $0xb8] sm:$0xff] %vm430, %v646
        %v656 = vld [vmem:[%s343] sm:$0xff]
        %v657 = vld [vmem:[%s343 + $0x8] sm:$0xf]
        %v658 = vld [vmem:[%s343 + $0xc] sm:$0xff]
        %v659 = vld [vmem:[%s343 + $0x14] sm:$0xf]
        %v664 = vunpack.c.l.b16 %v656
        %v665 = vunpack.c.h.b16 %v656
        %v666 = vunpack.c.l.b16 %v657
        %v667 = vunpack.c.l.b16 %v658
        %v668 = vunpack.c.h.b16 %v658
        %v669 = vunpack.c.l.b16 %v659
        %v670 = vpack.c.b16 %v667, %v664
        %v671 = vpack.c.b16 %v668, %v665
        %v672 = vpack.c.b16 %v669, %v666
        %673 = vrot.lane.b32.xlu0 %v670, 90
        %v674 = vpop.permute.xlu0 %673
        %675 = vrot.lane.b32.xlu0 %v671, 90
        %v676 = vpop.permute.xlu0 %675
        %677 = vrot.lane.b32.xlu0 %v672, 90
        %v678 = vpop.permute.xlu0 %677
        %vm679 = vcmask 736256
        %v680 = vsel %vm679, %v674, %v676
        %v681 = vsel %vm679, %v676, %v678
        %685 = vst [vmem:[#allocation2 + $0xc0] sm:$0xff] %v680
        %686 = vst [vmem:[#allocation2 + $0xc8] sm:$0xff] %v681
        %687 = vst.msk [vmem:[#allocation2 + $0xd0] sm:$0xff] %vm430, %v678
        %v688 = vld [vmem:[#allocation6] sm:$0xff]
        %v689 = vld [vmem:[#allocation6 + $0x8] sm:$0xff]
        %v690 = vld [vmem:[#allocation6 + $0x10] sm:$0xff]
        %v691 = vld [vmem:[#allocation6 + $0x18] sm:$0xff]
        %v692 = vld [vmem:[#allocation2] sm:$0xff]
        %v693 = vld [vmem:[#allocation2 + $0x8] sm:$0xff]
        %v694 = vld [vmem:[#allocation2 + $0x10] sm:$0xff]
        %v695 = vld [vmem:[#allocation2 + $0x18] sm:$0xff]
        %v696 = vld [vmem:[#allocation2 + $0x20] sm:$0xff]
        %v697 = vld [vmem:[#allocation2 + $0x28] sm:$0xff]
        %v698 = vld [vmem:[#allocation2 + $0x30] sm:$0xff]
        %v699 = vld [vmem:[#allocation2 + $0x38] sm:$0xff]
        %v700 = vld [vmem:[#allocation2 + $0x40] sm:$0xff]
        %v701 = vld [vmem:[#allocation2 + $0x48] sm:$0xff]
        %v702 = vld [vmem:[#allocation2 + $0x50] sm:$0xff]
        %v703 = vld [vmem:[#allocation2 + $0x58] sm:$0xff]
        %v704 = vld [vmem:[#allocation2 + $0x60] sm:$0xff]
        %v705 = vld [vmem:[#allocation2 + $0x68] sm:$0xff]
        %v706 = vld [vmem:[#allocation2 + $0x70] sm:$0xff]
        %v707 = vld [vmem:[#allocation2 + $0x78] sm:$0xff]
        %v708 = vld [vmem:[#allocation2 + $0x80] sm:$0xff]
        %v709 = vld [vmem:[#allocation2 + $0x88] sm:$0xff]
        %v710 = vld [vmem:[#allocation2 + $0x90] sm:$0xff]
        %v711 = vld [vmem:[#allocation2 + $0x98] sm:$0xff]
        %v712 = vld [vmem:[#allocation2 + $0xa0] sm:$0xff]
        %v713 = vld [vmem:[#allocation2 + $0xa8] sm:$0xff]
        %v714 = vld [vmem:[#allocation2 + $0xb0] sm:$0xff]
        %v715 = vld [vmem:[#allocation2 + $0xb8] sm:$0xff]
        %v716 = vld [vmem:[#allocation2 + $0xc0] sm:$0xff]
        %v717 = vld [vmem:[#allocation2 + $0xc8] sm:$0xff]
        %v718 = vld [vmem:[#allocation2 + $0xd0] sm:$0xff]
        %v719 = vld [vmem:[%s2] sm:$0xff]
        %v720 = vld [vmem:[%s2 + $0x8] sm:$0xff]
        %v721 = vld [vmem:[%s2 + $0x10] sm:$0xff]
        %v722 = vld [vmem:[%s2 + $0x18] sm:$0xff]
        %724 = vset.pattern.permute.xlu0 0
        %725 = vperm.xlu0 %724, %v719
        %v726 = vpop.permute.xlu0 %725
        %729 = vset.pattern.permute.xlu0 0
        %730 = vperm.xlu0 %729, %v720
        %v731 = vpop.permute.xlu0 %730
        %734 = vset.pattern.permute.xlu0 0
        %735 = vperm.xlu0 %734, %v721
        %v736 = vpop.permute.xlu0 %735
        %739 = vset.pattern.permute.xlu0 0
        %740 = vperm.xlu0 %739, %v722
        %v741 = vpop.permute.xlu0 %740
        %v747 = vunpack.c.l.b16 %v688
        %v748 = vunpack.c.h.b16 %v688
        %v749 = vunpack.c.l.b16 %v689
        %v750 = vunpack.c.h.b16 %v689
        %v751 = vunpack.c.l.b16 %v690
        %v752 = vunpack.c.h.b16 %v690
        %v753 = vunpack.c.l.b16 %v691
        %v754 = vunpack.c.h.b16 %v691
        %v755 = vpack.c.b16 %v749, %v747
        %v756 = vpack.c.b16 %v750, %v748
        %v757 = vpack.c.b16 %v753, %v751
        %v758 = vpack.c.b16 %v754, %v752
        %vm761 = vcmask 130048
        %v763 = vsel %vm761, %v756, 0
        %v766 = vsel %vm761, %v758, 0
        %768 = vmatprep.subr.bf16.mxu0 %v693
        %769 = vmatpush1.bf16.msra.mxu0 %v692
        %770 = vmatprep.subr.bf16.mxu0 %v696
        %771 = vmatpush1.bf16.msra.mxu0 %v695
        %772 = vmatprep.subr.bf16.mxu0 %v699
        %773 = vmatpush1.bf16.msra.mxu0 %v698
        %774 = vmatprep.subr.bf16.mxu0 %v702
        %775 = vmatpush1.bf16.msra.mxu0 %v701
        %776 = vmatprep.subr.bf16.mxu0 %v705
        %777 = vmatpush1.bf16.msra.mxu0 %v704
        %778 = vmatprep.subr.bf16.mxu0 %v708
        %779 = vmatpush1.bf16.msra.mxu0 %v707
        %780 = vmatprep.subr.bf16.mxu0 %v711
        %781 = vmatpush1.bf16.msra.mxu0 %v710
        %782 = vmatprep.subr.bf16.mxu0 %v714
        %783 = vmatpush1.bf16.msra.mxu0 %v713
        %784 = vmatprep.subr.bf16.mxu0 %v717
        %785 = vmatpush1.bf16.msra.mxu0 %v716
        %786 = vmatprep.subr.bf16.mxu0 0
        %787 = vmatpush1.bf16.msra.mxu0 0
        %788 = vmatprep.subr.bf16.mxu0 0
        %789 = vmatpush1.bf16.msra.mxu0 0
        %790 = vmatprep.subr.bf16.mxu0 0
        %791 = vmatpush1.bf16.msra.mxu0 0
        %792 = vmatprep.subr.bf16.mxu0 0
        %793 = vmatpush1.bf16.msra.mxu0 0
        %794 = vmatprep.subr.bf16.mxu0 0
        %795 = vmatpush1.bf16.msra.mxu0 0
        %796 = vmatprep.subr.bf16.mxu0 0
        %797 = vmatpush1.bf16.msra.mxu0 0
        %798 = vmatprep.subr.bf16.mxu0 0
        %799 = vmatpush1.bf16.msra.mxu0 0
        %800 = vmatprep.mubr.bf16.mxu0 %v763
        %801 = vmatmul.mubr.bf16.gmra.mrb[0].mxu0 %v755
        %v802 = vpop.f32.mrb[0].mxu0
        %v803 = vadd.f32 %v726, %v802
        %v804 = vpop.f32.mrb[0].mxu0
        %v805 = vadd.f32 %v726, %v804
        %v806 = vpop.f32.mrb[0].mxu0
        %v807 = vadd.f32 %v731, %v806
        %v808 = vpop.f32.mrb[0].mxu0
        %v809 = vadd.f32 %v731, %v808
        %810 = vmatprep.mubr.bf16.mxu0 %v766
        %811 = vmatmul.mubr.bf16.gmra.mrb[0].mxu0 %v757
        %v812 = vpop.f32.mrb[0].mxu0
        %v813 = vadd.f32 %v736, %v812
        %v814 = vpop.f32.mrb[0].mxu0
        %v815 = vadd.f32 %v736, %v814
        %v816 = vpop.f32.mrb[0].mxu0
        %v817 = vadd.f32 %v741, %v816
        %v818 = vpop.f32.mrb[0].mxu0
        %v819 = vadd.f32 %v741, %v818
        %820 = vdwg.mxu0
        %821 = vmatprep.subr.bf16.mxu0 0
        %822 = vmatpush1.bf16.msra.mxu0 %v694
        %823 = vmatprep.subr.bf16.mxu0 0
        %824 = vmatpush1.bf16.msra.mxu0 %v697
        %825 = vmatprep.subr.bf16.mxu0 0
        %826 = vmatpush1.bf16.msra.mxu0 %v700
        %827 = vmatprep.subr.bf16.mxu0 0
        %828 = vmatpush1.bf16.msra.mxu0 %v703
        %829 = vmatprep.subr.bf16.mxu0 0
        %830 = vmatpush1.bf16.msra.mxu0 %v706
        %831 = vmatprep.subr.bf16.mxu0 0
        %832 = vmatpush1.bf16.msra.mxu0 %v709
        %833 = vmatprep.subr.bf16.mxu0 0
        %834 = vmatpush1.bf16.msra.mxu0 %v712
        %835 = vmatprep.subr.bf16.mxu0 0
        %836 = vmatpush1.bf16.msra.mxu0 %v715
        %837 = vmatprep.subr.bf16.mxu0 0
        %838 = vmatpush1.bf16.msra.mxu0 %v718
        %839 = vmatprep.subr.bf16.mxu0 0
        %840 = vmatpush1.bf16.msra.mxu0 0
        %841 = vmatprep.subr.bf16.mxu0 0
        %842 = vmatpush1.bf16.msra.mxu0 0
        %843 = vmatprep.subr.bf16.mxu0 0
        %844 = vmatpush1.bf16.msra.mxu0 0
        %845 = vmatprep.subr.bf16.mxu0 0
        %846 = vmatpush1.bf16.msra.mxu0 0
        %847 = vmatprep.subr.bf16.mxu0 0
        %848 = vmatpush1.bf16.msra.mxu0 0
        %849 = vmatprep.subr.bf16.mxu0 0
        %850 = vmatpush1.bf16.msra.mxu0 0
        %851 = vmatprep.subr.bf16.mxu0 0
        %852 = vmatpush1.bf16.msra.mxu0 0
        %853 = vmatprep.mubr.bf16.mxu0 %v763
        %854 = vmatmul.mubr.bf16.gmra.mrb[0].mxu0 %v755
        %v855 = vpop.f32.mrb[0].mxu0
        %v856 = vadd.f32 %v726, %v855
        %v857 = vpop.f32.mrb[0].mxu0
        %v858 = vpop.f32.mrb[0].mxu0
        %v859 = vadd.f32 %v731, %v858
        %v860 = vpop.f32.mrb[0].mxu0
        %861 = vmatprep.mubr.bf16.mxu0 %v766
        %862 = vmatmul.mubr.bf16.gmra.mrb[0].mxu0 %v757
        %v863 = vpop.f32.mrb[0].mxu0
        %v864 = vadd.f32 %v736, %v863
        %v865 = vpop.f32.mrb[0].mxu0
        %v866 = vpop.f32.mrb[0].mxu0
        %v867 = vadd.f32 %v741, %v866
        %v868 = vpop.f32.mrb[0].mxu0
        %869 = vdwg.mxu0
        %v870 = vld [vmem:[%s406] sm:$0xff]
        %v871 = vld [vmem:[%s406 + $0x8] sm:$0xff]
        %v872 = vld [vmem:[%s406 + $0x10] sm:$0xff]
        %v873 = vld [vmem:[#allocation8] sm:$0xff]
        %v874 = vld [vmem:[#allocation8 + $0x8] sm:$0xff]
        %v875 = vld [vmem:[#allocation8 + $0x10] sm:$0xff]
        %v876 = vmul.f32 %v873, %v870
        %v877 = vmul.f32 %v874, %v871
        %v878 = vmul.f32 %v875, %v872
        %v879 = vadd.f32 %v803, %v876
        %v880 = vadd.f32 %v805, %v877
        %v881 = vadd.f32 %v856, %v878
        %v882 = vxor.u32 %v879, 2147483648
        %v883 = vxor.u32 %v880, 2147483648
        %v884 = vxor.u32 %v881, 2147483648
        %v885 = vmul.f32 %v882, 1.442695
        %v886 = vpow.pop %v885
        %v887 = vmul.f32 %v883, 1.442695
        %v888 = vpow.pop %v887
        %v889 = vmul.f32 %v884, 1.442695
        %v890 = vpow.pop %v889
        %v891 = vadd.f32 %v886, 1.0
        %v892 = vadd.f32 %v888, 1.0
        %v893 = vadd.f32 %v890, 1.0
        %v894 = vrcp.pop %v891
        %v895 = vmul.f32 1.0, %v894
        %v896 = vrcp.pop %v892
        %v897 = vmul.f32 1.0, %v896
        %v898 = vrcp.pop %v893
        %v899 = vmul.f32 1.0, %v898
        %v900 = vld [vmem:[#allocation9] sm:$0xff]
        %v901 = vld [vmem:[#allocation9 + $0x8] sm:$0xff]
        %v902 = vld [vmem:[#allocation9 + $0x10] sm:$0xff]
        %v903 = vmul.f32 %v900, %v870
        %v904 = vmul.f32 %v901, %v871
        %v905 = vmul.f32 %v902, %v872
        %v906 = vadd.f32 %v807, %v903
        %v907 = vadd.f32 %v809, %v904
        %v908 = vadd.f32 %v859, %v905
        %v909 = vxor.u32 %v906, 2147483648
        %v910 = vxor.u32 %v907, 2147483648
        %v911 = vxor.u32 %v908, 2147483648
        %v912 = vmul.f32 %v909, 1.442695
        %v913 = vpow.pop %v912
        %v914 = vmul.f32 %v910, 1.442695
        %v915 = vpow.pop %v914
        %v916 = vmul.f32 %v911, 1.442695
        %v917 = vpow.pop %v916
        %v918 = vadd.f32 %v913, 1.0
        %v919 = vadd.f32 %v915, 1.0
        %v920 = vadd.f32 %v917, 1.0
        %v921 = vrcp.pop %v918
        %v922 = vmul.f32 1.0, %v921
        %v923 = vrcp.pop %v919
        %v924 = vmul.f32 1.0, %v923
        %v925 = vrcp.pop %v920
        %v926 = vmul.f32 1.0, %v925
        %v927 = vmul.f32 %v922, %v870
        %v928 = vmul.f32 %v924, %v871
        %v929 = vmul.f32 %v926, %v872
        %v930 = vtanh.pop %v813
        %v931 = vtanh.pop %v815
        %v932 = vtanh.pop %v864
        %v933 = vmul.f32 %v895, %v930
        %v934 = vmul.f32 %v897, %v931
        %v935 = vmul.f32 %v899, %v932
        %v936 = vadd.f32 %v927, %v933
        %v937 = vadd.f32 %v928, %v934
        %v938 = vadd.f32 %v929, %v935
        %v939 = vld [vmem:[#allocation11] sm:$0xff]
        %v940 = vld [vmem:[#allocation11 + $0x8] sm:$0xff]
        %v941 = vld [vmem:[#allocation11 + $0x10] sm:$0xff]
        %v942 = vmul.f32 %v939, %v936
        %v943 = vmul.f32 %v940, %v937
        %v944 = vmul.f32 %v941, %v938
        %v945 = vadd.f32 %v817, %v942
        %v946 = vadd.f32 %v819, %v943
        %v947 = vadd.f32 %v867, %v944
        %v948 = vxor.u32 %v945, 2147483648
        %v949 = vxor.u32 %v946, 2147483648
        %v950 = vxor.u32 %v947, 2147483648
        %v951 = vmul.f32 %v948, 1.442695
        %v952 = vpow.pop %v951
        %v953 = vmul.f32 %v949, 1.442695
        %v954 = vpow.pop %v953
        %v955 = vmul.f32 %v950, 1.442695
        %v956 = vpow.pop %v955
        %v957 = vadd.f32 %v952, 1.0
        %v958 = vadd.f32 %v954, 1.0
        %v959 = vadd.f32 %v956, 1.0
        %v960 = vrcp.pop %v957
        %v961 = vmul.f32 1.0, %v960
        %v962 = vrcp.pop %v958
        %v963 = vmul.f32 1.0, %v962
        %v964 = vrcp.pop %v959
        %v965 = vmul.f32 1.0, %v964
        %v966 = vtanh.pop %v936
        %v967 = vtanh.pop %v937
        %v968 = vtanh.pop %v938
        %v969 = vmul.f32 %v961, %v966
        %v970 = vmul.f32 %v963, %v967
        %v971 = vmul.f32 %v965, %v968
        %972 = vst [vmem:[%s394] sm:$0xff] %v969
        %973 = vst [vmem:[%s394 + $0x8] sm:$0xff] %v970
        %974 = vst.msk [vmem:[%s394 + $0x10] sm:$0xff] %vm430, %v971
        %975 = vst [vmem:[%s401] sm:$0xff] %v936
        %976 = vst [vmem:[%s401 + $0x8] sm:$0xff] %v937
        %977 = vst.msk [vmem:[%s401 + $0x10] sm:$0xff] %vm430, %v938
        %s978 = sand.u32 %s196, 1
        %s979 = scalar_lea.sflag [#allocation5], %s978
        %s980 = sand.u32 %s196, 1
        %s981 = smul.addr %s980, 24
        %s982 = scalar_lea.vmem [#allocation12], %s981
        %s983 = sand.u32 %s222, 1
        %s984 = scalar_lea.sflag [#allocation14], %s983
        %s985 = sand.u32 %s222, 1
        %s986 = smul.addr %s985, 24
        %s987 = scalar_lea.vmem [#allocation13], %s986
        // Predicated region
        $region69: #{tpu_custom_call.1} parent=47 // pred_check
          %p988 = pneg %p206
        $region70: #{tpu_custom_call.1} parent=47 // pred_check_branch
          %990 = sbr.rel (%p988) target = $region72
        $region71: #{tpu_custom_call.1} parent=47 // pred_region
          %s992 = ssub.s32 384, 384
          %993 = vsyncadd %s979, %s992
          %s994 = smul.addr %s31, 3
          %s995 = smul.addr %s994, 128
          %s996 = scalar_lea.hbm %s7, %s995
          %s998 = sshll.u32 %s982, 4
          %s999 = int_to_ptr.vmem [resolvable:$true] %s998
          %1001 = dma.vmem_to_hbm [thread:$0]  %s999, 384, %s996, %s979
        $region72: #{tpu_custom_call.1} parent=47 // pred_fallthru
          _
        // Predicated region
        $region73: #{tpu_custom_call.1} parent=47 // pred_check
          %p1002 = pneg %p232
        $region74: #{tpu_custom_call.1} parent=47 // pred_check_branch
          %1004 = sbr.rel (%p1002) target = $region76
        $region75: #{tpu_custom_call.1} parent=47 // pred_region
          %s1006 = ssub.s32 384, 384
          %1007 = vsyncadd %s984, %s1006
          %s1008 = smul.addr %s31, 3
          %s1009 = smul.addr %s1008, 128
          %s1010 = scalar_lea.hbm %s8, %s1009
          %s1012 = sshll.u32 %s987, 4
          %s1013 = int_to_ptr.vmem [resolvable:$true] %s1012
          %1015 = dma.vmem_to_hbm [thread:$0]  %s1013, 384, %s1010, %s984
        $region76: #{tpu_custom_call.1} parent=47 // pred_fallthru
          _
      $region48: #{tpu_custom_call.1} parent=5 // pred_fallthru
        _
      %p1016 = scmp.le.s32.totalorder 2, %s26
      // Predicated region
      $region77: #{tpu_custom_call.1} parent=5 // pred_check
        %p1017 = pneg %p1016
      $region78: #{tpu_custom_call.1} parent=5 // pred_check_branch
        %1019 = sbr.rel (%p1017) target = $region80
      $region79: #{tpu_custom_call.1} parent=5 // pred_region
        %s1020 = ssub.s32 %s26, 2
        // Predicated region
        $region81: #{tpu_custom_call.1} parent=79 // pred_check
          %p1021 = pneg %p212
        $region82: #{tpu_custom_call.1} parent=79 // pred_check_branch
          %1023 = sbr.rel (%p1021) target = $region84
        $region83: #{tpu_custom_call.1} parent=79 // pred_region
          %s1024 = sand.u32 %s197, 1
          %s1025 = scalar_lea.sflag [#allocation5], %s1024
          %s1026 = sand.u32 %s197, 1
          %s1027 = smul.addr %s1026, 24
          %s1028 = scalar_lea.vmem [#allocation12], %s1027
          %1029 = dma.done %s1025, 384
        $region84: #{tpu_custom_call.1} parent=79 // pred_fallthru
          _
        // Predicated region
        $region85: #{tpu_custom_call.1} parent=79 // pred_check
          %p1030 = pneg %p238
        $region86: #{tpu_custom_call.1} parent=79 // pred_check_branch
          %1032 = sbr.rel (%p1030) target = $region88
        $region87: #{tpu_custom_call.1} parent=79 // pred_region
          %s1033 = sand.u32 %s223, 1
          %s1034 = scalar_lea.sflag [#allocation14], %s1033
          %s1035 = sand.u32 %s223, 1
          %s1036 = smul.addr %s1035, 24
          %s1037 = scalar_lea.vmem [#allocation13], %s1036
          %1038 = dma.done %s1034, 384
        $region88: #{tpu_custom_call.1} parent=79 // pred_fallthru
          _
      $region80: #{tpu_custom_call.1} parent=5 // pred_fallthru
        _
    $region6: #{tpu_custom_call.1} parent=1 // loop_footer
      %s30 = sadd.s32 1, %s26
    $region7: #{tpu_custom_call.1} parent=1 // loop_footer_branch
      %25 = sbr.rel target = $region3
    $region8: #{tpu_custom_call.1} parent=1 // loop_exit
      _
    %1039 = vsyncpa [#allocation4], 1
    %s1040 = scalar_lea.sflag [#allocation4], 1
    %1041 = vsyncpa %s1040, 1
    %1042 = vsyncpa [#allocation7], 1
    %1043 = vsyncpa [#allocation10], 1
    %1044 = vsyncpa [#allocation5], 1
    %s1045 = scalar_lea.sflag [#allocation5], 1
    %1046 = vsyncpa %s1045, 1
    %1047 = vsyncpa [#allocation14], 1
    %s1048 = scalar_lea.sflag [#allocation14], 1
    %1049 = vsyncpa %s1048, 1

</llo_original>
